<compile_context>
chip_gen: v7x
topology: tpu7x:2x2x1
jax: 0.10.0
libtpu: 0.0.40
codegen_flags: <defaults>
</compile_context>

<pallas_src>
import functools

import jax
import jax.numpy as jnp
from jax.experimental import pallas as pl
from jax.experimental.pallas import tpu as pltpu


_DEFAULT_BLOCK_BUDGET = 2 << 20          # ~2 MiB per stream per block (sweepable)
_VMEM_LIMIT_BYTES = 32 * 1024 * 1024     # explicit scoped-VMEM ceiling (safe v5e..v7x)


def _round_down(x, m):
    return (x // m) * m


def _default_compute_dtype(io_dtype):
    """f32 math unless I/O is bf16 on a chip with a native-bf16 VPU (v6e/v7x)."""
    if jnp.dtype(io_dtype) == jnp.dtype(jnp.bfloat16):
        try:
            kind = jax.devices()[0].device_kind.lower()
        except Exception:
            kind = ""
        if ("v6" in kind) or ("v7" in kind):
            return jnp.bfloat16
    return jnp.float32


# --------------------------------------------------------------------------- #
# Kernels
# --------------------------------------------------------------------------- #
def _rows_kernel(x_ref, skip_ref, p_ref, o_ref, *, compute_dtype):
    """Lane-dense path: (tr, tc) blocks of the (N*C, H*W) view.

    p_ref is (tr, 2) = [eff_scale, eff_bias] per row (clip + dropout prefused)."""
    x = x_ref[...].astype(compute_dtype)
    s = skip_ref[...].astype(compute_dtype)
    p = p_ref[...].astype(compute_dtype)
    y = x + p[:, 0:1] * s + p[:, 1:2]
    o_ref[...] = y.astype(o_ref.dtype)


def _nchw_kernel(x_ref, skip_ref, scale_ref, bias_ref, o_ref, *, compute_dtype):
    """Native NCHW path (W % 128 == 0): data blocks (1, bc, bh, W), params (1, bc, 1, 1)."""
    x = x_ref[...].astype(compute_dtype)
    s = skip_ref[...].astype(compute_dtype)
    y = x + scale_ref[...].astype(compute_dtype) * s + bias_ref[...].astype(compute_dtype)
    o_ref[...] = y.astype(o_ref.dtype)


# --------------------------------------------------------------------------- #
# Path A: small / non-128-aligned W  ->  lane-dense (N*C, H*W) view
# --------------------------------------------------------------------------- #
def _scale_skip_rows(x, skip, eff_scale, eff_bias, compute_dtype, block_budget_bytes):
    N, C, H, W = x.shape
    R, L = N * C, H * W
    itemsize = x.dtype.itemsize

    x2 = x.reshape(R, L)
    s2 = skip.reshape(R, L)
    params = jnp.stack([eff_scale.reshape(R), eff_bias.reshape(R)], axis=-1)  # (R, 2)

    budget_elems = max(8 * 128, block_budget_bytes // itemsize)
    lane_footprint = max(128, -(-L // 128) * 128)       # padded row length in lanes

    if 8 * lane_footprint <= budget_elems:
        # Preferred: full rows per block -> contiguous DMA slabs, params resident.
        tc = L
        tr = _round_down(budget_elems // lane_footprint, 8)
        if R >= 8:
            tr = max(8, min(tr, _round_down(R, 8)))
            # keep >= 2 row blocks so the parallel grid can shard across v7x's 2 TCs
            if R >= 16 and tr >= R:
                tr = max(8, _round_down(R // 2, 8))
        else:
            tr = R
    else:
        # Very large rows: split the lane axis into 128-multiples; only the edge
        # column block (if any) gets masked stores.
        tr = 8 if R >= 8 else R
        tc = max(128, _round_down(budget_elems // max(tr, 1), 128))
        tc = min(tc, max(128, _round_down(L, 128)))

    grid = (pl.cdiv(R, tr), pl.cdiv(L, tc))
    data_spec = pl.BlockSpec((tr, tc), lambda i, j: (i, j))
    prm_spec = pl.BlockSpec((tr, 2), lambda i, j: (i, 0))

    flops = 3 * R * L
    bytes_accessed = 3 * R * L * itemsize + params.size * params.dtype.itemsize

    out2 = pl.pallas_call(
        functools.partial(_rows_kernel, compute_dtype=compute_dtype),
        out_shape=jax.ShapeDtypeStruct((R, L), x.dtype),
        grid=grid,
        in_specs=[data_spec, data_spec, prm_spec],
        out_specs=data_spec,
        compiler_params=pltpu.CompilerParams(
            dimension_semantics=("parallel", "parallel"),
            vmem_limit_bytes=_VMEM_LIMIT_BYTES),
        cost_estimate=pl.CostEstimate(flops=flops, transcendentals=0,
                                      bytes_accessed=bytes_accessed),
    )(x2, s2, params)
    return out2.reshape(N, C, H, W)


# --------------------------------------------------------------------------- #
# Path B: W % 128 == 0  ->  native NCHW tiling, no reshape / relayout
# --------------------------------------------------------------------------- #
def _scale_skip_nchw(x, skip, eff_scale, eff_bias, compute_dtype, block_budget_bytes):
    N, C, H, W = x.shape
    itemsize = x.dtype.itemsize
    budget_elems = max(8 * 128, block_budget_bytes // itemsize)
    hw = H * W

    if hw <= budget_elems:
        bc = int(max(1, min(C, budget_elems // hw)))
        bh = H
        # keep >= 2 grid blocks for megacore when N alone cannot provide them
        if N == 1 and bc >= C and C > 1:
            bc = -(-C // 2)
    else:
        bc = 1
        if H > 8:
            bh = max(8, min(_round_down(H, 8), _round_down(max(budget_elems // W, 8), 8)))
        else:
            bh = H

    grid = (N, pl.cdiv(C, bc), pl.cdiv(H, bh))
    data_spec = pl.BlockSpec((1, bc, bh, W), lambda n, c, h: (n, c, h, 0))
    prm_spec = pl.BlockSpec((1, bc, 1, 1), lambda n, c, h: (n, c, 0, 0))

    scale4 = eff_scale.reshape(N, C, 1, 1)
    bias4 = eff_bias.reshape(N, C, 1, 1)

    flops = 3 * x.size
    bytes_accessed = 3 * x.size * itemsize + 2 * scale4.size * scale4.dtype.itemsize

    return pl.pallas_call(
        functools.partial(_nchw_kernel, compute_dtype=compute_dtype),
        out_shape=jax.ShapeDtypeStruct(x.shape, x.dtype),
        grid=grid,
        in_specs=[data_spec, data_spec, prm_spec, prm_spec],
        out_specs=data_spec,
        compiler_params=pltpu.CompilerParams(
            dimension_semantics=("parallel", "parallel", "parallel"),
            vmem_limit_bytes=_VMEM_LIMIT_BYTES),
        cost_estimate=pl.CostEstimate(flops=flops, transcendentals=0,
                                      bytes_accessed=bytes_accessed),
    )(x, skip, scale4, bias4)


# --------------------------------------------------------------------------- #
# Public wrapper
# --------------------------------------------------------------------------- #
def scale_skip_2d(x, skip, skipscale, skipbias, *, drop_p=0.1, training=False,
                  rng=None, block_budget_bytes=_DEFAULT_BLOCK_BUDGET,
                  compute_dtype=None):
    """Pallas implementation of ScaleSkip2D.forward.

    x, skip:              (N, C, H, W)
    skipscale, skipbias:  (1, C, 1, 1) learnable parameters
    """
    N, C, H, W = x.shape
    assert skip.shape == x.shape
    if compute_dtype is None:
        compute_dtype = _default_compute_dtype(x.dtype)

    # Fold clip + Dropout2d (per-(n, c) channel mask with 1/(1-p) scaling) into
    # per-row scale/bias — O(N*C) wrapper work, removes per-element clip/mask.
    scale = jnp.clip(skipscale.astype(jnp.float32).reshape(1, C), -10.0, 10.0)
    bias = jnp.clip(skipbias.astype(jnp.float32).reshape(1, C), -1.0, 1.0)

    if training and drop_p > 0.0:
        if rng is None:
            raise ValueError("training=True with drop_p > 0 requires an rng key")
        keep = jax.random.bernoulli(rng, 1.0 - drop_p, (N, C))
        drop = keep.astype(jnp.float32) / jnp.float32(1.0 - drop_p)
    else:
        drop = jnp.ones((N, C), jnp.float32)

    eff_scale = (scale * drop).astype(compute_dtype)                  # (N, C)
    eff_bias = jnp.broadcast_to(bias, (N, C)).astype(compute_dtype)   # (N, C)

    if W % 128 == 0:
        return _scale_skip_nchw(x, skip, eff_scale, eff_bias,
                                compute_dtype, block_budget_bytes)
    return _scale_skip_rows(x, skip, eff_scale, eff_bias,
                            compute_dtype, block_budget_bytes)


if __name__ == "__main__":
    key = jax.random.PRNGKey(0)
    kx, ks, kscale, kbias, kx2, ks2 = jax.random.split(key, 6)

    # Parameter init matching torch.nn.init.normal_:
    #   skipscale ~ N(1.0, 0.02), skipbias ~ N(0.0, 0.02)
    C = 4
    skipscale = 1.0 + 0.02 * jax.random.normal(kscale, (1, C, 1, 1), jnp.float32)
    skipbias = 0.0 + 0.02 * jax.random.normal(kbias, (1, C, 1, 1), jnp.float32)

    def ref(a, b):
        return a + jnp.clip(skipscale, -10.0, 10.0) * b + jnp.clip(skipbias, -1.0, 1.0)

    # --- small-W path (W % 128 != 0): lane-dense (N*C, H*W) kernel -----------
    N, H, W = 2, 16, 16
    x = jax.random.normal(kx, (N, C, H, W), dtype=jnp.float32)
    skip = jax.random.normal(ks, (N, C, H, W), dtype=jnp.float32)
    out = jax.block_until_ready(
        scale_skip_2d(x, skip, skipscale, skipbias, drop_p=0.1, training=False))
    assert out.shape == x.shape
    assert jnp.allclose(out, ref(x, skip), atol=1e-6, rtol=1e-6), "rows-path mismatch"

    # --- lane-aligned path (W % 128 == 0): native NCHW tiling, no reshape ----
    N2, H2, W2 = 2, 8, 128
    x2 = jax.random.normal(kx2, (N2, C, H2, W2), dtype=jnp.float32)
    skip2 = jax.random.normal(ks2, (N2, C, H2, W2), dtype=jnp.float32)
    out2 = jax.block_until_ready(
        scale_skip_2d(x2, skip2, skipscale, skipbias, drop_p=0.1, training=False))
    assert jnp.allclose(out2, ref(x2, skip2), atol=1e-6, rtol=1e-6), "nchw-path mismatch"

    print("KERNEL_OK")
</pallas_src>

<mosaic_0001>
module attributes {stable_mosaic.version = 11 : i64} {
  func.func @_rows_kernel(%arg0: i32, %arg1: i32, %arg2: memref<8x256xf32, #tpu.memory_space<vmem>>, %arg3: memref<8x256xf32, #tpu.memory_space<vmem>>, %arg4: memref<8x2xf32, #tpu.memory_space<vmem>>, %arg5: memref<8x256xf32, #tpu.memory_space<vmem>>) attributes {dimension_semantics = [#tpu.dimension_semantics<parallel>, #tpu.dimension_semantics<parallel>], iteration_bounds = array<i64: 1, 1>, scalar_prefetch = 0 : i64, scratch_operands = 0 : i64, tpu.core_type = #tpu.core_type<tc>, window_params = [{transform_indices = @transform_0, window_bounds = array<i64: 8, 256>}, {transform_indices = @transform_1, window_bounds = array<i64: 8, 256>}, {transform_indices = @transform_2, window_bounds = array<i64: 8, 2>}, {transform_indices = @transform_3, window_bounds = array<i64: 8, 256>}]} {
    %c0 = arith.constant 0 : index
    %c0_0 = arith.constant 0 : index
    %0 = vector.load %arg2[%c0, %c0_0] : memref<8x256xf32, #tpu.memory_space<vmem>>, vector<8x256xf32>
    %c0_1 = arith.constant 0 : index
    %c0_2 = arith.constant 0 : index
    %1 = vector.load %arg3[%c0_1, %c0_2] : memref<8x256xf32, #tpu.memory_space<vmem>>, vector<8x256xf32>
    %c0_3 = arith.constant 0 : index
    %c0_4 = arith.constant 0 : index
    %2 = vector.load %arg4[%c0_3, %c0_4] : memref<8x2xf32, #tpu.memory_space<vmem>>, vector<8x2xf32>
    %3 = vector.extract_strided_slice %2 {offsets = [0, 0], sizes = [8, 1], strides = [1, 1]} : vector<8x2xf32> to vector<8x1xf32>
    %4 = vector.broadcast %3 : vector<8x1xf32> to vector<8x256xf32>
    %5 = arith.mulf %4, %1 : vector<8x256xf32>
    %6 = arith.addf %0, %5 : vector<8x256xf32>
    %7 = vector.extract_strided_slice %2 {offsets = [0, 1], sizes = [8, 1], strides = [1, 1]} : vector<8x2xf32> to vector<8x1xf32>
    %8 = vector.broadcast %7 : vector<8x1xf32> to vector<8x256xf32>
    %9 = arith.addf %6, %8 : vector<8x256xf32>
    %c0_5 = arith.constant 0 : index
    %c0_6 = arith.constant 0 : index
    %10 = vector.load %arg5[%c0_5, %c0_6] : memref<8x256xf32, #tpu.memory_space<vmem>>, vector<8x256xf32>
    tpu.vector_store %arg5[%c0_5, %c0_6], %9 {strides = array<i32>} : memref<8x256xf32, #tpu.memory_space<vmem>>, vector<8x256xf32>,
    return
  }
  func.func @transform_0(%arg0: i32, %arg1: i32) -> (i32, i32) {
    %c0_i32 = arith.constant 0 : i32
    return %arg0, %arg1 : i32, i32
  }
  func.func @transform_1(%arg0: i32, %arg1: i32) -> (i32, i32) {
    %c0_i32 = arith.constant 0 : i32
    return %arg0, %arg1 : i32, i32
  }
  func.func @transform_2(%arg0: i32, %arg1: i32) -> (i32, i32) {
    %c0_i32 = arith.constant 0 : i32
    %c0_i32_0 = arith.constant 0 : i32
    return %arg0, %c0_i32 : i32, i32
  }
  func.func @transform_3(%arg0: i32, %arg1: i32) -> (i32, i32) {
    %c0_i32 = arith.constant 0 : i32
    return %arg0, %arg1 : i32, i32
  }
}

</mosaic_0001>

<llo_original>
// kernel: tpu_custom_call.1
$region0: #{tpu_custom_call.1}
  #allocation0 [shape = 'u32[]', space=smem, size = 0x4, offset = 0x4, fixed_abs, tag = 'smem constant byte address 0x4 - core index']
  #allocation1 [shape = 'u32[144,128]{1,0:T(1,128)}', space=vmem, size = 0x12000, scoped, tag = 'internal scratch']
  %s0 = inlined_call_operand.hbm [shape: f32[8,256], index: 0, kind: input, shape index: {}]
  %s1 = inlined_call_operand.hbm [shape: f32[8,256], index: 1, kind: input, shape index: {}]
  %s2 = inlined_call_operand.vmem [shape: f32[8,2], index: 2, kind: input, shape index: {}]
  %s3 = inlined_call_operand.hbm [shape: f32[8,256], index: 3, kind: output, shape index: {}]
  %s4 = sld [smem:[#allocation0]]
  $region30: #{tpu_custom_call.1} parent=0
    _
  %s6 = ssub.s32 1, %s4
  %s7 = scalar_select 0, %s6, %s4
  $region1: #{tpu_custom_call.1} parent=0
    #allocation2 [shape = 'u8[8192]{0}', space=vmem, size = 0x2000, scoped, tag = 'input window, operand 0, single buffered']
    #allocation3 [shape = 's32[1]{0}', space=sflag, size = 0x4, scoped, tag = 'scoped memory for tpu_custom_call.1']
    #allocation4 [shape = 's32[1]{0}', space=sflag, size = 0x4, scoped, tag = 'scoped memory for tpu_custom_call.1']
    #allocation5 [shape = 'u8[8192]{0}', space=vmem, size = 0x2000, scoped, tag = 'input window, operand 1, single buffered']
    #allocation6 [shape = 's32[1]{0}', space=sflag, size = 0x4, scoped, tag = 'scoped memory for tpu_custom_call.1']
    #allocation7 [shape = 'u8[8192]{0}', space=vmem, size = 0x2000, scoped, tag = 'output window, operand 0, single buffered']
    %8 = vsyncpa [#allocation3], 0
    %9 = vsyncpa [#allocation6], 0
    %10 = vsyncpa [#allocation4], 0
    // Predicated region
    $region2: #{tpu_custom_call.1} parent=1 // pred_check
      _
    $region3: #{tpu_custom_call.1} parent=1 // pred_check_branch
      %12 = sbr.rel (0) target = $region5
    $region4: #{tpu_custom_call.1} parent=1 // pred_region
      %s14 = ssub.s32 256, 256
      %15 = vsyncadd [#allocation3], %s14
      %s17 = sshll.u32 [#allocation2], 4
      %s18 = int_to_ptr.vmem [resolvable:$true] %s17
      %20 = dma.hbm_to_vmem [thread:$0]  %s0, 256, %s18, [#allocation3]
    $region5: #{tpu_custom_call.1} parent=1 // pred_fallthru
      _
    // Predicated region
    $region6: #{tpu_custom_call.1} parent=1 // pred_check
      _
    $region7: #{tpu_custom_call.1} parent=1 // pred_check_branch
      %22 = sbr.rel (0) target = $region9
    $region8: #{tpu_custom_call.1} parent=1 // pred_region
      %s24 = ssub.s32 256, 256
      %25 = vsyncadd [#allocation6], %s24
      %s27 = sshll.u32 [#allocation5], 4
      %s28 = int_to_ptr.vmem [resolvable:$true] %s27
      %30 = dma.hbm_to_vmem [thread:$0]  %s1, 256, %s28, [#allocation6]
    $region9: #{tpu_custom_call.1} parent=1 // pred_fallthru
      _
    // Predicated region
    $region10: #{tpu_custom_call.1} parent=1 // pred_check
      _
    $region11: #{tpu_custom_call.1} parent=1 // pred_check_branch
      %32 = sbr.rel (0) target = $region13
    $region12: #{tpu_custom_call.1} parent=1 // pred_region
      _
    $region13: #{tpu_custom_call.1} parent=1 // pred_fallthru
      _
    // Predicated region
    $region14: #{tpu_custom_call.1} parent=1 // pred_check
      _
    $region15: #{tpu_custom_call.1} parent=1 // pred_check_branch
      %34 = sbr.rel (0) target = $region17
    $region16: #{tpu_custom_call.1} parent=1 // pred_region
      %35 = dma.done [#allocation3], 256
    $region17: #{tpu_custom_call.1} parent=1 // pred_fallthru
      _
    // Predicated region
    $region18: #{tpu_custom_call.1} parent=1 // pred_check
      _
    $region19: #{tpu_custom_call.1} parent=1 // pred_check_branch
      %37 = sbr.rel (0) target = $region21
    $region20: #{tpu_custom_call.1} parent=1 // pred_region
      %38 = dma.done [#allocation6], 256
    $region21: #{tpu_custom_call.1} parent=1 // pred_fallthru
      _
    %v39 = vld [vmem:[#allocation2] sm:$0xff]
    %v40 = vld [vmem:[#allocation2 + $0x8] sm:$0xff]
    %v41 = vld [vmem:[#allocation5] sm:$0xff]
    %v42 = vld [vmem:[#allocation5 + $0x8] sm:$0xff]
    %v43 = vld [vmem:[%s2] sm:$0xff]
    %45 = vset.pattern.permute.xlu0 0
    %46 = vperm.xlu0 %45, %v43
    %v47 = vpop.permute.xlu0 %46
    %v49 = vmul.f32 %v47, %v41
    %v50 = vmul.f32 %v47, %v42
    %v51 = vadd.f32 %v39, %v49
    %v52 = vadd.f32 %v40, %v50
    %53 = vset.pattern.permute.xlu0 1
    %54 = vperm.xlu0 %53, %v43
    %v55 = vpop.permute.xlu0 %54
    %v57 = vadd.f32 %v51, %v55
    %v58 = vadd.f32 %v52, %v55
    %59 = vst [vmem:[#allocation7] sm:$0xff] %v57
    %60 = vst [vmem:[#allocation7 + $0x8] sm:$0xff] %v58
    // Predicated region
    $region22: #{tpu_custom_call.1} parent=1 // pred_check
      _
    $region23: #{tpu_custom_call.1} parent=1 // pred_check_branch
      %62 = sbr.rel (0) target = $region25
    $region24: #{tpu_custom_call.1} parent=1 // pred_region
      %s64 = ssub.s32 256, 256
      %65 = vsyncadd [#allocation4], %s64
      %s67 = sshll.u32 [#allocation7], 4
      %s68 = int_to_ptr.vmem [resolvable:$true] %s67
      %70 = dma.vmem_to_hbm [thread:$0]  %s68, 256, %s3, [#allocation4]
    $region25: #{tpu_custom_call.1} parent=1 // pred_fallthru
      _
    // Predicated region
    $region26: #{tpu_custom_call.1} parent=1 // pred_check
      _
    $region27: #{tpu_custom_call.1} parent=1 // pred_check_branch
      %72 = sbr.rel (0) target = $region29
    $region28: #{tpu_custom_call.1} parent=1 // pred_region
      %73 = dma.done [#allocation4], 256
    $region29: #{tpu_custom_call.1} parent=1 // pred_fallthru
      _
    %74 = vsyncpa [#allocation3], 1
    %75 = vsyncpa [#allocation6], 1
    %76 = vsyncpa [#allocation4], 1

</llo_original>
